<compile_context>
chip_gen: v7x
topology: tpu7x:2x2x1
jax: 0.10.0
libtpu: 0.0.40
codegen_flags: <defaults>
</compile_context>

<pallas_src>
import jax
import jax.numpy as jnp
from jax import lax
from jax.experimental import pallas as pl
from jax.experimental.pallas import tpu as pltpu


def _round_up(n, m):
    return ((n + m - 1) // m) * m


def _epilogue_dtype():
    """bf16 tanh/bias epilogue on v6e/v7x; f32 on v5e and older (no bf16 VPU/EUP)."""
    try:
        kind = jax.devices()[0].device_kind.lower()
    except Exception:
        return jnp.float32
    for old in ("v2", "v3", "v4", "v5"):
        if old in kind:
            return jnp.float32
    return jnp.bfloat16


def _make_mlp_kernel(act_dtype):
    def _mlp_kernel(x_ref,
                    w0_ref, b0_ref,
                    w1_ref, b1_ref,
                    w2_ref, b2_ref,
                    w3t_ref, b3_ref,
                    o_ref):
        # One batch tile, fully resident in VMEM. x arrives f32 and is cast to
        # bf16 here (VPU work, hidden under MXU/DMA) instead of in the wrapper.
        x = x_ref[...].astype(jnp.bfloat16)

        def layer(h, w_ref, b_ref):
            acc = jnp.dot(h, w_ref[...], preferred_element_type=jnp.float32)
            acc = acc + b_ref[...]
            # bf16 tanh on v6e/v7x, f32 on v5e; result kept bf16 for the next MXU op.
            return jnp.tanh(acc.astype(act_dtype)).astype(jnp.bfloat16)

        h = layer(x, w0_ref, b0_ref)
        h = layer(h, w1_ref, b1_ref)
        h = layer(h, w2_ref, b2_ref)

        # Final layer computed in transposed form so the stored block is
        # lane-dense: (1, hidden) contracted with (tile, hidden) -> (1, tile).
        out_t = lax.dot_general(
            w3t_ref[...], h,
            dimension_numbers=(((1,), (1,)), ((), ())),
            preferred_element_type=jnp.float32)
        o_ref[...] = (out_t + b3_ref[...]).astype(o_ref.dtype)

    return _mlp_kernel


def value_net_forward(states, kernel_params, *, batch_tile=4096, epilogue_dtype=None):
    """states: [B, state_dim] float32 -> [B, 1] float32."""
    (w0, b0), (w1, b1), (w2, b2), (w3t, b3) = kernel_params
    B, state_dim = states.shape
    if epilogue_dtype is None:
        epilogue_dtype = _epilogue_dtype()

    # Tile: multiple of 128 (lane-dense output block, bf16 sublane packing),
    # clamped to the (rounded) batch so tiny batches don't allocate huge tiles.
    tile = max(128, min(_round_up(batch_tile, 128), _round_up(B, 128)))
    grid_n = pl.cdiv(B, tile)
    b_pad = grid_n * tile

    x = states
    if b_pad != B:
        # Only pad when the batch is ragged w.r.t. the tile (f32, no dtype cast).
        x = jnp.pad(x, ((0, b_pad - B), (0, 0)))

    def const_spec(arr):
        return pl.BlockSpec(arr.shape, lambda i, _nd=arr.ndim: (0,) * _nd)

    in_specs = [
        pl.BlockSpec((tile, state_dim), lambda i: (i, 0)),
        const_spec(w0), const_spec(b0),
        const_spec(w1), const_spec(b1),
        const_spec(w2), const_spec(b2),
        const_spec(w3t), const_spec(b3),
    ]
    # Single flat lane-dense output row; one (1, tile) block per grid step.
    out_specs = pl.BlockSpec((1, tile), lambda i: (0, i))

    # VMEM budget: double-buffered f32 x blocks + live (tile,128) intermediates
    # (generous) + weights/biases/output slack; clamp to 48 MiB (< v7x 64 MiB).
    est = 2 * tile * state_dim * 4 + 10 * tile * 128 * 4 + 4 * 1024 * 1024
    vmem_limit = int(min(48 * 1024 * 1024, max(32 * 1024 * 1024, est)))

    out_row = pl.pallas_call(
        _make_mlp_kernel(epilogue_dtype),
        out_shape=jax.ShapeDtypeStruct((1, b_pad), jnp.float32),
        grid_spec=pltpu.PrefetchScalarGridSpec(
            num_scalar_prefetch=0,
            grid=(grid_n,),
            in_specs=in_specs,
            out_specs=out_specs,
        ),
        compiler_params=pltpu.CompilerParams(
            dimension_semantics=("parallel",),
            vmem_limit_bytes=vmem_limit),
    )(x, w0, b0, w1, b1, w2, b2, w3t, b3)

    return out_row[0, :B].reshape(B, 1)


def init_value_net_params(key, state_dim, hidden_sizes=(50, 50, 50)):
    """nn.Linear-style init: U(-1/sqrt(fan_in), 1/sqrt(fan_in)).
    Weights stored [in_features, out_features]; biases [1, out_features]; f32."""
    sizes = [state_dim, *hidden_sizes, 1]
    params = []
    for in_f, out_f in zip(sizes[:-1], sizes[1:]):
        key, kw, kb = jax.random.split(key, 3)
        bound = 1.0 / jnp.sqrt(jnp.float32(in_f))
        w = jax.random.uniform(kw, (in_f, out_f), jnp.float32, -bound, bound)
        b = jax.random.uniform(kb, (1, out_f), jnp.float32, -bound, bound)
        params.append((w, b))
    return params


def prepare_params(params, *, lane=128, compute_dtype=jnp.bfloat16):
    """Zero-pad hidden widths to a multiple of 128 and cast weights for the MXU.

    Padded weight columns / bias entries AND the next layer's corresponding
    weight rows are all zero, so padded lanes stay exactly zero through tanh
    (tanh(0) == 0). The last weight is stored transposed as [1, padded_hidden]
    so the kernel can emit a lane-dense (1, batch_tile) output row. Biases f32.
    """
    (w0, b0), (w1, b1), (w2, b2), (w3, b3) = params
    h0, h1, h2 = w0.shape[1], w1.shape[1], w2.shape[1]
    p0, p1, p2 = _round_up(h0, lane), _round_up(h1, lane), _round_up(h2, lane)

    w0p = jnp.pad(w0, ((0, 0), (0, p0 - h0)))
    b0p = jnp.pad(b0, ((0, 0), (0, p0 - h0)))
    w1p = jnp.pad(w1, ((0, p0 - h0), (0, p1 - h1)))
    b1p = jnp.pad(b1, ((0, 0), (0, p1 - h1)))
    w2p = jnp.pad(w2, ((0, p1 - h1), (0, p2 - h2)))
    b2p = jnp.pad(b2, ((0, 0), (0, p2 - h2)))
    w3t = jnp.pad(w3, ((0, p2 - h2), (0, 0))).T      # (1, p2)

    cd = compute_dtype
    return ((w0p.astype(cd), b0p.astype(jnp.float32)),
            (w1p.astype(cd), b1p.astype(jnp.float32)),
            (w2p.astype(cd), b2p.astype(jnp.float32)),
            (w3t.astype(cd), b3.astype(jnp.float32)))


def value_net_reference(states, params):
    (w0, b0), (w1, b1), (w2, b2), (w3, b3) = params
    h = jnp.tanh(states @ w0 + b0)
    h = jnp.tanh(h @ w1 + b1)
    h = jnp.tanh(h @ w2 + b2)
    return h @ w3 + b3


if __name__ == "__main__":
    key = jax.random.PRNGKey(0)
    k_params, k1, k2, k3 = jax.random.split(key, 4)

    state_dim = 32
    params = init_value_net_params(k_params, state_dim, hidden_sizes=(50, 50, 50))
    kparams = prepare_params(params)

    # 1) Small batch: single grid step, partial tile (pad path).
    batch = 16
    states = jax.random.normal(k1, (batch, state_dim), jnp.float32)
    out = jax.block_until_ready(value_net_forward(states, kparams))
    ref = value_net_reference(states, params)
    assert out.shape == (batch, 1), out.shape
    assert jnp.allclose(out, ref, atol=5e-2, rtol=5e-2), "mismatch (small batch)"

    # 2) Ragged batch: multi-step grid + tail padding + lane-dense stores.
    batch2 = 200
    states2 = jax.random.normal(k2, (batch2, state_dim), jnp.float32)
    out2 = jax.block_until_ready(
        value_net_forward(states2, kparams, batch_tile=128))
    ref2 = value_net_reference(states2, params)
    assert out2.shape == (batch2, 1), out2.shape
    assert jnp.allclose(out2, ref2, atol=5e-2, rtol=5e-2), "mismatch (multi-tile)"

    # 3) Tile-aligned batch: no wrapper-side pad copy at all, multi-step grid.
    batch3 = 256
    states3 = jax.random.normal(k3, (batch3, state_dim), jnp.float32)
    out3 = jax.block_until_ready(
        value_net_forward(states3, kparams, batch_tile=128))
    ref3 = value_net_reference(states3, params)
    assert out3.shape == (batch3, 1), out3.shape
    assert jnp.allclose(out3, ref3, atol=5e-2, rtol=5e-2), "mismatch (aligned batch)"

    print("KERNEL_OK")
</pallas_src>

<mosaic_0001>
module attributes {stable_mosaic.version = 11 : i64} {
  func.func @_mlp_kernel(%arg0: i32, %arg1: memref<128x32xf32, #tpu.memory_space<vmem>>, %arg2: memref<32x128xbf16, #tpu.memory_space<vmem>>, %arg3: memref<1x128xf32, #tpu.memory_space<vmem>>, %arg4: memref<128x128xbf16, #tpu.memory_space<vmem>>, %arg5: memref<1x128xf32, #tpu.memory_space<vmem>>, %arg6: memref<128x128xbf16, #tpu.memory_space<vmem>>, %arg7: memref<1x128xf32, #tpu.memory_space<vmem>>, %arg8: memref<1x128xbf16, #tpu.memory_space<vmem>>, %arg9: memref<1x1xf32, #tpu.memory_space<vmem>>, %arg10: memref<1x128xf32, #tpu.memory_space<vmem>>) attributes {dimension_semantics = [#tpu.dimension_semantics<parallel>], iteration_bounds = array<i64: 1>, scalar_prefetch = 0 : i64, scratch_operands = 0 : i64, tpu.core_type = #tpu.core_type<tc>, window_params = [{transform_indices = @transform_0, window_bounds = array<i64: 128, 32>}, {pipeline_mode = #tpu.pipeline_mode<synchronous>, transform_indices = @transform_1, window_bounds = array<i64: 32, 128>}, {pipeline_mode = #tpu.pipeline_mode<synchronous>, transform_indices = @transform_2, window_bounds = array<i64: 1, 128>}, {pipeline_mode = #tpu.pipeline_mode<synchronous>, transform_indices = @transform_3, window_bounds = array<i64: 128, 128>}, {pipeline_mode = #tpu.pipeline_mode<synchronous>, transform_indices = @transform_4, window_bounds = array<i64: 1, 128>}, {pipeline_mode = #tpu.pipeline_mode<synchronous>, transform_indices = @transform_5, window_bounds = array<i64: 128, 128>}, {pipeline_mode = #tpu.pipeline_mode<synchronous>, transform_indices = @transform_6, window_bounds = array<i64: 1, 128>}, {pipeline_mode = #tpu.pipeline_mode<synchronous>, transform_indices = @transform_7, window_bounds = array<i64: 1, 128>}, {pipeline_mode = #tpu.pipeline_mode<synchronous>, transform_indices = @transform_8, window_bounds = array<i64: 1, 1>}, {transform_indices = @transform_9, window_bounds = array<i64: 1, 128>}]} {
    %c0 = arith.constant 0 : index
    %c0_0 = arith.constant 0 : index
    %0 = vector.load %arg1[%c0, %c0_0] : memref<128x32xf32, #tpu.memory_space<vmem>>, vector<128x32xf32>
    %1 = arith.truncf %0 : vector<128x32xf32> to vector<128x32xbf16>
    %c0_1 = arith.constant 0 : index
    %c0_2 = arith.constant 0 : index
    %2 = vector.load %arg2[%c0_1, %c0_2] : memref<32x128xbf16, #tpu.memory_space<vmem>>, vector<32x128xbf16>
    %cst = arith.constant dense<0.000000e+00> : vector<128x128xf32>
    %3 = tpu.matmul %1, %2, %cst {dimension_numbers = #tpu.dot_dimension_numbers<[1], [0], [0], [1], [0, 0, 1, 1], [], []>} : vector<128x32xbf16>, vector<32x128xbf16>, vector<128x128xf32> -> vector<128x128xf32>
    %c0_3 = arith.constant 0 : index
    %c0_4 = arith.constant 0 : index
    %4 = vector.load %arg3[%c0_3, %c0_4] : memref<1x128xf32, #tpu.memory_space<vmem>>, vector<1x128xf32>
    %5 = vector.broadcast %4 : vector<1x128xf32> to vector<128x128xf32>
    %6 = arith.addf %3, %5 : vector<128x128xf32>
    %7 = arith.truncf %6 : vector<128x128xf32> to vector<128x128xbf16>
    %8 = math.tanh %7 : vector<128x128xbf16>
    %c0_5 = arith.constant 0 : index
    %c0_6 = arith.constant 0 : index
    %9 = vector.load %arg4[%c0_5, %c0_6] : memref<128x128xbf16, #tpu.memory_space<vmem>>, vector<128x128xbf16>
    %cst_7 = arith.constant dense<0.000000e+00> : vector<128x128xf32>
    %10 = tpu.matmul %8, %9, %cst_7 {dimension_numbers = #tpu.dot_dimension_numbers<[1], [0], [0], [1], [0, 0, 1, 1], [], []>} : vector<128x128xbf16>, vector<128x128xbf16>, vector<128x128xf32> -> vector<128x128xf32>
    %c0_8 = arith.constant 0 : index
    %c0_9 = arith.constant 0 : index
    %11 = vector.load %arg5[%c0_8, %c0_9] : memref<1x128xf32, #tpu.memory_space<vmem>>, vector<1x128xf32>
    %12 = vector.broadcast %11 : vector<1x128xf32> to vector<128x128xf32>
    %13 = arith.addf %10, %12 : vector<128x128xf32>
    %14 = arith.truncf %13 : vector<128x128xf32> to vector<128x128xbf16>
    %15 = math.tanh %14 : vector<128x128xbf16>
    %c0_10 = arith.constant 0 : index
    %c0_11 = arith.constant 0 : index
    %16 = vector.load %arg6[%c0_10, %c0_11] : memref<128x128xbf16, #tpu.memory_space<vmem>>, vector<128x128xbf16>
    %cst_12 = arith.constant dense<0.000000e+00> : vector<128x128xf32>
    %17 = tpu.matmul %15, %16, %cst_12 {dimension_numbers = #tpu.dot_dimension_numbers<[1], [0], [0], [1], [0, 0, 1, 1], [], []>} : vector<128x128xbf16>, vector<128x128xbf16>, vector<128x128xf32> -> vector<128x128xf32>
    %c0_13 = arith.constant 0 : index
    %c0_14 = arith.constant 0 : index
    %18 = vector.load %arg7[%c0_13, %c0_14] : memref<1x128xf32, #tpu.memory_space<vmem>>, vector<1x128xf32>
    %19 = vector.broadcast %18 : vector<1x128xf32> to vector<128x128xf32>
    %20 = arith.addf %17, %19 : vector<128x128xf32>
    %21 = arith.truncf %20 : vector<128x128xf32> to vector<128x128xbf16>
    %22 = math.tanh %21 : vector<128x128xbf16>
    %c0_15 = arith.constant 0 : index
    %c0_16 = arith.constant 0 : index
    %23 = vector.load %arg8[%c0_15, %c0_16] : memref<1x128xbf16, #tpu.memory_space<vmem>>, vector<1x128xbf16>
    %cst_17 = arith.constant dense<0.000000e+00> : vector<1x128xf32>
    %24 = tpu.matmul %23, %22, %cst_17 {dimension_numbers = #tpu.dot_dimension_numbers<[1], [1], [0], [0], [0, 0, 1, 0], [], []>} : vector<1x128xbf16>, vector<128x128xbf16>, vector<1x128xf32> -> vector<1x128xf32>
    %c0_18 = arith.constant 0 : index
    %c0_19 = arith.constant 0 : index
    %25 = vector.load %arg9[%c0_18, %c0_19] : memref<1x1xf32, #tpu.memory_space<vmem>>, vector<1x1xf32>
    %26 = vector.broadcast %25 : vector<1x1xf32> to vector<1x128xf32>
    %27 = arith.addf %24, %26 : vector<1x128xf32>
    %c0_20 = arith.constant 0 : index
    %c0_21 = arith.constant 0 : index
    %28 = vector.load %arg10[%c0_20, %c0_21] : memref<1x128xf32, #tpu.memory_space<vmem>>, vector<1x128xf32>
    tpu.vector_store %arg10[%c0_20, %c0_21], %27 {strides = array<i32>} : memref<1x128xf32, #tpu.memory_space<vmem>>, vector<1x128xf32>,
    return
  }
  func.func @transform_0(%arg0: i32) -> (i32, i32) {
    %c0_i32 = arith.constant 0 : i32
    %c0_i32_0 = arith.constant 0 : i32
    return %arg0, %c0_i32 : i32, i32
  }
  func.func @transform_1(%arg0: i32) -> (i32, i32) {
    %c0_i32 = arith.constant 0 : i32
    %c0_i32_0 = arith.constant 0 : i32
    %c0_i32_1 = arith.constant 0 : i32
    return %c0_i32, %c0_i32_0 : i32, i32
  }
  func.func @transform_2(%arg0: i32) -> (i32, i32) {
    %c0_i32 = arith.constant 0 : i32
    %c0_i32_0 = arith.constant 0 : i32
    %c0_i32_1 = arith.constant 0 : i32
    return %c0_i32, %c0_i32_0 : i32, i32
  }
  func.func @transform_3(%arg0: i32) -> (i32, i32) {
    %c0_i32 = arith.constant 0 : i32
    %c0_i32_0 = arith.constant 0 : i32
    %c0_i32_1 = arith.constant 0 : i32
    return %c0_i32, %c0_i32_0 : i32, i32
  }
  func.func @transform_4(%arg0: i32) -> (i32, i32) {
    %c0_i32 = arith.constant 0 : i32
    %c0_i32_0 = arith.constant 0 : i32
    %c0_i32_1 = arith.constant 0 : i32
    return %c0_i32, %c0_i32_0 : i32, i32
  }
  func.func @transform_5(%arg0: i32) -> (i32, i32) {
    %c0_i32 = arith.constant 0 : i32
    %c0_i32_0 = arith.constant 0 : i32
    %c0_i32_1 = arith.constant 0 : i32
    return %c0_i32, %c0_i32_0 : i32, i32
  }
  func.func @transform_6(%arg0: i32) -> (i32, i32) {
    %c0_i32 = arith.constant 0 : i32
    %c0_i32_0 = arith.constant 0 : i32
    %c0_i32_1 = arith.constant 0 : i32
    return %c0_i32, %c0_i32_0 : i32, i32
  }
  func.func @transform_7(%arg0: i32) -> (i32, i32) {
    %c0_i32 = arith.constant 0 : i32
    %c0_i32_0 = arith.constant 0 : i32
    %c0_i32_1 = arith.constant 0 : i32
    return %c0_i32, %c0_i32_0 : i32, i32
  }
  func.func @transform_8(%arg0: i32) -> (i32, i32) {
    %c0_i32 = arith.constant 0 : i32
    %c0_i32_0 = arith.constant 0 : i32
    %c0_i32_1 = arith.constant 0 : i32
    return %c0_i32, %c0_i32_0 : i32, i32
  }
  func.func @transform_9(%arg0: i32) -> (i32, i32) {
    %c0_i32 = arith.constant 0 : i32
    %c0_i32_0 = arith.constant 0 : i32
    return %c0_i32, %arg0 : i32, i32
  }
}

</mosaic_0001>

<llo_original>
// kernel: tpu_custom_call.1
$region0: #{tpu_custom_call.1}
  #allocation0 [shape = 'u32[]', space=smem, size = 0x4, offset = 0x4, fixed_abs, tag = 'smem constant byte address 0x4 - core index']
  #allocation1 [shape = 'u32[144,128]{1,0:T(1,128)}', space=vmem, size = 0x12000, scoped, tag = 'internal scratch']
  #allocation2 [shape = 'f32[1,1]{1,0:T(1,128)S(1)}', space=vmem, size = 0x200, scoped, tag = 'scoped memory for tpu_custom_call.1']
  %s0 = inlined_call_operand.vmem [shape: f32[128,32], index: 0, kind: input, shape index: {}]
  %s1 = inlined_call_operand.vmem [shape: bf16[32,128], index: 1, kind: input, shape index: {}]
  %s2 = inlined_call_operand.vmem [shape: f32[1,128], index: 2, kind: input, shape index: {}]
  %s3 = inlined_call_operand.vmem [shape: bf16[128,128], index: 3, kind: input, shape index: {}]
  %s4 = inlined_call_operand.vmem [shape: f32[1,128], index: 4, kind: input, shape index: {}]
  %s5 = inlined_call_operand.vmem [shape: bf16[128,128], index: 5, kind: input, shape index: {}]
  %s6 = inlined_call_operand.vmem [shape: f32[1,128], index: 6, kind: input, shape index: {}]
  %s7 = inlined_call_operand.vmem [shape: bf16[1,128], index: 7, kind: input, shape index: {}]
  %s8 = inlined_call_operand.<no memory space> [shape: f32[1,1], index: 8, kind: input, shape index: {}]
  %s9 = inlined_call_operand.hbm [shape: f32[1,128], index: 9, kind: output, shape index: {}]
  %s10 = sld [smem:[#allocation0]]
  $region46: #{tpu_custom_call.1} parent=0
    _
  %s12 = ssub.s32 1, %s10
  %s13 = scalar_select 0, %s12, %s10
  %v14 = vstv %s8
  %15 = vst [vmem:[#allocation2] sm:$0x1] %v14
  $region1: #{tpu_custom_call.1} parent=0
    #allocation3 [shape = 'u8[512]{0}', space=vmem, size = 0x400, scoped, tag = 'output window, operand 0, single buffered']
    #allocation4 [shape = 's32[1]{0}', space=sflag, size = 0x4, scoped, tag = 'scoped memory for tpu_custom_call.1']
    %16 = vsyncpa [#allocation4], 0
    // Predicated region
    $region2: #{tpu_custom_call.1} parent=1 // pred_check
      _
    $region3: #{tpu_custom_call.1} parent=1 // pred_check_branch
      %18 = sbr.rel (0) target = $region5
    $region4: #{tpu_custom_call.1} parent=1 // pred_region
      _
    $region5: #{tpu_custom_call.1} parent=1 // pred_fallthru
      _
    // Predicated region
    $region6: #{tpu_custom_call.1} parent=1 // pred_check
      _
    $region7: #{tpu_custom_call.1} parent=1 // pred_check_branch
      %20 = sbr.rel (0) target = $region9
    $region8: #{tpu_custom_call.1} parent=1 // pred_region
      _
    $region9: #{tpu_custom_call.1} parent=1 // pred_fallthru
      _
    // Predicated region
    $region10: #{tpu_custom_call.1} parent=1 // pred_check
      _
    $region11: #{tpu_custom_call.1} parent=1 // pred_check_branch
      %22 = sbr.rel (0) target = $region13
    $region12: #{tpu_custom_call.1} parent=1 // pred_region
      _
    $region13: #{tpu_custom_call.1} parent=1 // pred_fallthru
      _
    // Predicated region
    $region14: #{tpu_custom_call.1} parent=1 // pred_check
      _
    $region15: #{tpu_custom_call.1} parent=1 // pred_check_branch
      %24 = sbr.rel (0) target = $region17
    $region16: #{tpu_custom_call.1} parent=1 // pred_region
      _
    $region17: #{tpu_custom_call.1} parent=1 // pred_fallthru
      _
    // Predicated region
    $region18: #{tpu_custom_call.1} parent=1 // pred_check
      _
    $region19: #{tpu_custom_call.1} parent=1 // pred_check_branch
      %26 = sbr.rel (0) target = $region21
    $region20: #{tpu_custom_call.1} parent=1 // pred_region
      _
    $region21: #{tpu_custom_call.1} parent=1 // pred_fallthru
      _
    // Predicated region
    $region22: #{tpu_custom_call.1} parent=1 // pred_check
      _
    $region23: #{tpu_custom_call.1} parent=1 // pred_check_branch
      %28 = sbr.rel (0) target = $region25
    $region24: #{tpu_custom_call.1} parent=1 // pred_region
      _
    $region25: #{tpu_custom_call.1} parent=1 // pred_fallthru
      _
    // Predicated region
    $region26: #{tpu_custom_call.1} parent=1 // pred_check
      _
    $region27: #{tpu_custom_call.1} parent=1 // pred_check_branch
      %30 = sbr.rel (0) target = $region29
    $region28: #{tpu_custom_call.1} parent=1 // pred_region
      _
    $region29: #{tpu_custom_call.1} parent=1 // pred_fallthru
      _
    // Predicated region
    $region30: #{tpu_custom_call.1} parent=1 // pred_check
      _
    $region31: #{tpu_custom_call.1} parent=1 // pred_check_branch
      %32 = sbr.rel (0) target = $region33
    $region32: #{tpu_custom_call.1} parent=1 // pred_region
      _
    $region33: #{tpu_custom_call.1} parent=1 // pred_fallthru
      _
    // Predicated region
    $region34: #{tpu_custom_call.1} parent=1 // pred_check
      _
    $region35: #{tpu_custom_call.1} parent=1 // pred_check_branch
      %34 = sbr.rel (0) target = $region37
    $region36: #{tpu_custom_call.1} parent=1 // pred_region
      _
    $region37: #{tpu_custom_call.1} parent=1 // pred_fallthru
      _
    %v36 = vld [vmem:[%s0] sm:$0xff]
    %v37 = vld [vmem:[%s0 + $0x8] sm:$0xff]
    %v38 = vld [vmem:[%s0 + $0x10] sm:$0xff]
    %v39 = vld [vmem:[%s0 + $0x18] sm:$0xff]
    %v40 = vld [vmem:[%s0 + $0x20] sm:$0xff]
    %v41 = vld [vmem:[%s0 + $0x28] sm:$0xff]
    %v42 = vld [vmem:[%s0 + $0x30] sm:$0xff]
    %v43 = vld [vmem:[%s0 + $0x38] sm:$0xff]
    %v44 = vld [vmem:[%s0 + $0x40] sm:$0xff]
    %v45 = vld [vmem:[%s0 + $0x48] sm:$0xff]
    %v46 = vld [vmem:[%s0 + $0x50] sm:$0xff]
    %v47 = vld [vmem:[%s0 + $0x58] sm:$0xff]
    %v48 = vld [vmem:[%s0 + $0x60] sm:$0xff]
    %v49 = vld [vmem:[%s0 + $0x68] sm:$0xff]
    %v50 = vld [vmem:[%s0 + $0x70] sm:$0xff]
    %v51 = vld [vmem:[%s0 + $0x78] sm:$0xff]
    %v52 = vpack.c.bf16 %v37, %v36
    %v53 = vpack.c.bf16 %v39, %v38
    %v54 = vpack.c.bf16 %v41, %v40
    %v55 = vpack.c.bf16 %v43, %v42
    %v56 = vpack.c.bf16 %v45, %v44
    %v57 = vpack.c.bf16 %v47, %v46
    %v58 = vpack.c.bf16 %v49, %v48
    %v59 = vpack.c.bf16 %v51, %v50
    %v60 = vld [vmem:[%s1] sm:$0xf]
    %v61 = vld [vmem:[%s1 + $0x4] sm:$0xf]
    %v62 = vld [vmem:[%s1 + $0x8] sm:$0xf]
    %v63 = vld [vmem:[%s1 + $0xc] sm:$0xf]
    %v64 = vld [vmem:[%s2] sm:$0x1]
    %v66 = vlaneseq
    %v67 = vshrl.u32 %v66, 7
    %v68 = vsub.s32 0, %v67
    %v69 = vrot.slane %v64, %v68
    %v75 = vunpack.c.l.b16 %v60
    %v76 = vunpack.c.l.b16 %v61
    %v77 = vunpack.c.l.b16 %v62
    %v78 = vunpack.c.l.b16 %v63
    %v79 = vpack.c.b16 %v76, %v75
    %v80 = vpack.c.b16 %v78, %v77
    %vm83 = vcmask 261120
    %v85 = vsel %vm83, %v52, 0
    %v88 = vsel %vm83, %v53, 0
    %v91 = vsel %vm83, %v54, 0
    %v94 = vsel %vm83, %v55, 0
    %v97 = vsel %vm83, %v56, 0
    %v100 = vsel %vm83, %v57, 0
    %v103 = vsel %vm83, %v58, 0
    %v106 = vsel %vm83, %v59, 0
    %108 = vmatprep.subr.bf16.mxu0 0
    %109 = vmatpush1.bf16.msra.mxu0 %v79
    %110 = vmatprep.subr.bf16.mxu0 0
    %111 = vmatpush1.bf16.msra.mxu0 %v80
    %112 = vmatprep.subr.bf16.mxu0 0
    %113 = vmatpush1.bf16.msra.mxu0 0
    %114 = vmatprep.subr.bf16.mxu0 0
    %115 = vmatpush1.bf16.msra.mxu0 0
    %116 = vmatprep.subr.bf16.mxu0 0
    %117 = vmatpush1.bf16.msra.mxu0 0
    %118 = vmatprep.subr.bf16.mxu0 0
    %119 = vmatpush1.bf16.msra.mxu0 0
    %120 = vmatprep.subr.bf16.mxu0 0
    %121 = vmatpush1.bf16.msra.mxu0 0
    %122 = vmatprep.subr.bf16.mxu0 0
    %123 = vmatpush1.bf16.msra.mxu0 0
    %124 = vmatprep.subr.bf16.mxu0 0
    %125 = vmatpush1.bf16.msra.mxu0 0
    %126 = vmatprep.subr.bf16.mxu0 0
    %127 = vmatpush1.bf16.msra.mxu0 0
    %128 = vmatprep.subr.bf16.mxu0 0
    %129 = vmatpush1.bf16.msra.mxu0 0
    %130 = vmatprep.subr.bf16.mxu0 0
    %131 = vmatpush1.bf16.msra.mxu0 0
    %132 = vmatprep.subr.bf16.mxu0 0
    %133 = vmatpush1.bf16.msra.mxu0 0
    %134 = vmatprep.subr.bf16.mxu0 0
    %135 = vmatpush1.bf16.msra.mxu0 0
    %136 = vmatprep.subr.bf16.mxu0 0
    %137 = vmatpush1.bf16.msra.mxu0 0
    %138 = vmatprep.subr.bf16.mxu0 0
    %139 = vmatpush1.bf16.msra.mxu0 0
    %140 = vmatprep.mubr.bf16.mxu0 0
    %141 = vmatmul.mubr.bf16.gmra.mrb[0].mxu0 %v85
    %v142 = vpop.f32.mrb[0].mxu0
    %v143 = vadd.f32 %v69, %v142
    %v144 = vpop.f32.mrb[0].mxu0
    %v145 = vpop.f32.mrb[0].mxu0
    %v146 = vadd.f32 %v69, %v145
    %v147 = vpop.f32.mrb[0].mxu0
    %148 = vmatprep.mubr.bf16.mxu0 0
    %149 = vmatmul.mubr.bf16.gmra.mrb[0].mxu0 %v88
    %v150 = vpop.f32.mrb[0].mxu0
    %v151 = vadd.f32 %v69, %v150
    %v152 = vpop.f32.mrb[0].mxu0
    %v153 = vpop.f32.mrb[0].mxu0
    %v154 = vadd.f32 %v69, %v153
    %v155 = vpop.f32.mrb[0].mxu0
    %156 = vmatprep.mubr.bf16.mxu0 0
    %157 = vmatmul.mubr.bf16.gmra.mrb[0].mxu0 %v91
    %v158 = vpop.f32.mrb[0].mxu0
    %v159 = vadd.f32 %v69, %v158
    %v160 = vpop.f32.mrb[0].mxu0
    %v161 = vpop.f32.mrb[0].mxu0
    %v162 = vadd.f32 %v69, %v161
    %v163 = vpop.f32.mrb[0].mxu0
    %164 = vmatprep.mubr.bf16.mxu0 0
    %165 = vmatmul.mubr.bf16.gmra.mrb[0].mxu0 %v94
    %v166 = vpop.f32.mrb[0].mxu0
    %v167 = vadd.f32 %v69, %v166
    %v168 = vpop.f32.mrb[0].mxu0
    %v169 = vpop.f32.mrb[0].mxu0
    %v170 = vadd.f32 %v69, %v169
    %v171 = vpop.f32.mrb[0].mxu0
    %172 = vmatprep.mubr.bf16.mxu0 0
    %173 = vmatmul.mubr.bf16.gmra.mrb[0].mxu0 %v97
    %v174 = vpop.f32.mrb[0].mxu0
    %v175 = vadd.f32 %v69, %v174
    %v176 = vpop.f32.mrb[0].mxu0
    %v177 = vpop.f32.mrb[0].mxu0
    %v178 = vadd.f32 %v69, %v177
    %v179 = vpop.f32.mrb[0].mxu0
    %180 = vmatprep.mubr.bf16.mxu0 0
    %181 = vmatmul.mubr.bf16.gmra.mrb[0].mxu0 %v100
    %v182 = vpop.f32.mrb[0].mxu0
    %v183 = vadd.f32 %v69, %v182
    %v184 = vpop.f32.mrb[0].mxu0
    %v185 = vpop.f32.mrb[0].mxu0
    %v186 = vadd.f32 %v69, %v185
    %v187 = vpop.f32.mrb[0].mxu0
    %188 = vmatprep.mubr.bf16.mxu0 0
    %189 = vmatmul.mubr.bf16.gmra.mrb[0].mxu0 %v103
    %v190 = vpop.f32.mrb[0].mxu0
    %v191 = vadd.f32 %v69, %v190
    %v192 = vpop.f32.mrb[0].mxu0
    %v193 = vpop.f32.mrb[0].mxu0
    %v194 = vadd.f32 %v69, %v193
    %v195 = vpop.f32.mrb[0].mxu0
    %196 = vmatprep.mubr.bf16.mxu0 0
    %197 = vmatmul.mubr.bf16.gmra.mrb[0].mxu0 %v106
    %v198 = vpop.f32.mrb[0].mxu0
    %v199 = vadd.f32 %v69, %v198
    %v200 = vpop.f32.mrb[0].mxu0
    %v201 = vpop.f32.mrb[0].mxu0
    %v202 = vadd.f32 %v69, %v201
    %v203 = vpop.f32.mrb[0].mxu0
    %204 = vdwg.mxu0
    %v205 = vpack.c.bf16 %v146, %v143
    %v206 = vpack.c.bf16 %v154, %v151
    %v207 = vpack.c.bf16 %v162, %v159
    %v208 = vpack.c.bf16 %v170, %v167
    %v209 = vpack.c.bf16 %v178, %v175
    %v210 = vpack.c.bf16 %v186, %v183
    %v211 = vpack.c.bf16 %v194, %v191
    %v212 = vpack.c.bf16 %v202, %v199
    %v213 = vtanh.bf16.pop %v205
    %v214 = vtanh.bf16.pop %v206
    %v215 = vtanh.bf16.pop %v207
    %v216 = vtanh.bf16.pop %v208
    %v217 = vtanh.bf16.pop %v209
    %v218 = vtanh.bf16.pop %v210
    %v219 = vtanh.bf16.pop %v211
    %v220 = vtanh.bf16.pop %v212
    %v221 = vld [vmem:[%s3] sm:$0xf]
    %v222 = vld [vmem:[%s3 + $0x4] sm:$0xf]
    %v223 = vld [vmem:[%s3 + $0x8] sm:$0xf]
    %v224 = vld [vmem:[%s3 + $0xc] sm:$0xf]
    %v225 = vld [vmem:[%s3 + $0x10] sm:$0xf]
    %v226 = vld [vmem:[%s3 + $0x14] sm:$0xf]
    %v227 = vld [vmem:[%s3 + $0x18] sm:$0xf]
    %v228 = vld [vmem:[%s3 + $0x1c] sm:$0xf]
    %v229 = vld [vmem:[%s3 + $0x20] sm:$0xf]
    %v230 = vld [vmem:[%s3 + $0x24] sm:$0xf]
    %v231 = vld [vmem:[%s3 + $0x28] sm:$0xf]
    %v232 = vld [vmem:[%s3 + $0x2c] sm:$0xf]
    %v233 = vld [vmem:[%s3 + $0x30] sm:$0xf]
    %v234 = vld [vmem:[%s3 + $0x34] sm:$0xf]
    %v235 = vld [vmem:[%s3 + $0x38] sm:$0xf]
    %v236 = vld [vmem:[%s3 + $0x3c] sm:$0xf]
    %v237 = vld [vmem:[%s4] sm:$0x1]
    %v239 = vlaneseq
    %v240 = vshrl.u32 %v239, 7
    %v241 = vsub.s32 0, %v240
    %v242 = vrot.slane %v237, %v241
    %v260 = vunpack.c.l.b16 %v221
    %v261 = vunpack.c.l.b16 %v222
    %v262 = vunpack.c.l.b16 %v223
    %v263 = vunpack.c.l.b16 %v224
    %v264 = vunpack.c.l.b16 %v225
    %v265 = vunpack.c.l.b16 %v226
    %v266 = vunpack.c.l.b16 %v227
    %v267 = vunpack.c.l.b16 %v228
    %v268 = vunpack.c.l.b16 %v229
    %v269 = vunpack.c.l.b16 %v230
    %v270 = vunpack.c.l.b16 %v231
    %v271 = vunpack.c.l.b16 %v232
    %v272 = vunpack.c.l.b16 %v233
    %v273 = vunpack.c.l.b16 %v234
    %v274 = vunpack.c.l.b16 %v235
    %v275 = vunpack.c.l.b16 %v236
    %v276 = vpack.c.b16 %v261, %v260
    %v277 = vpack.c.b16 %v263, %v262
    %v278 = vpack.c.b16 %v265, %v264
    %v279 = vpack.c.b16 %v267, %v266
    %v280 = vpack.c.b16 %v269, %v268
    %v281 = vpack.c.b16 %v271, %v270
    %v282 = vpack.c.b16 %v273, %v272
    %v283 = vpack.c.b16 %v275, %v274
    %292 = vmatprep.subr.bf16.mxu0 0
    %293 = vmatpush1.bf16.msra.mxu0 %v276
    %294 = vmatprep.subr.bf16.mxu0 0
    %295 = vmatpush1.bf16.msra.mxu0 %v277
    %296 = vmatprep.subr.bf16.mxu0 0
    %297 = vmatpush1.bf16.msra.mxu0 %v278
    %298 = vmatprep.subr.bf16.mxu0 0
    %299 = vmatpush1.bf16.msra.mxu0 %v279
    %300 = vmatprep.subr.bf16.mxu0 0
    %301 = vmatpush1.bf16.msra.mxu0 %v280
    %302 = vmatprep.subr.bf16.mxu0 0
    %303 = vmatpush1.bf16.msra.mxu0 %v281
    %304 = vmatprep.subr.bf16.mxu0 0
    %305 = vmatpush1.bf16.msra.mxu0 %v282
    %306 = vmatprep.subr.bf16.mxu0 0
    %307 = vmatpush1.bf16.msra.mxu0 %v283
    %308 = vmatprep.subr.bf16.mxu0 0
    %309 = vmatpush1.bf16.msra.mxu0 0
    %310 = vmatprep.subr.bf16.mxu0 0
    %311 = vmatpush1.bf16.msra.mxu0 0
    %312 = vmatprep.subr.bf16.mxu0 0
    %313 = vmatpush1.bf16.msra.mxu0 0
    %314 = vmatprep.subr.bf16.mxu0 0
    %315 = vmatpush1.bf16.msra.mxu0 0
    %316 = vmatprep.subr.bf16.mxu0 0
    %317 = vmatpush1.bf16.msra.mxu0 0
    %318 = vmatprep.subr.bf16.mxu0 0
    %319 = vmatpush1.bf16.msra.mxu0 0
    %320 = vmatprep.subr.bf16.mxu0 0
    %321 = vmatpush1.bf16.msra.mxu0 0
    %322 = vmatprep.subr.bf16.mxu0 0
    %323 = vmatpush1.bf16.msra.mxu0 0
    %324 = vmatprep.mubr.bf16.mxu0 0
    %325 = vmatmul.mubr.bf16.gmra.mrb[0].mxu0 %v213
    %v326 = vpop.f32.mrb[0].mxu0
    %v327 = vadd.f32 %v242, %v326
    %v328 = vpop.f32.mrb[0].mxu0
    %v329 = vpop.f32.mrb[0].mxu0
    %v330 = vadd.f32 %v242, %v329
    %v331 = vpop.f32.mrb[0].mxu0
    %332 = vmatprep.mubr.bf16.mxu0 0
    %333 = vmatmul.mubr.bf16.gmra.mrb[0].mxu0 %v214
    %v334 = vpop.f32.mrb[0].mxu0
    %v335 = vadd.f32 %v242, %v334
    %v336 = vpop.f32.mrb[0].mxu0
    %v337 = vpop.f32.mrb[0].mxu0
    %v338 = vadd.f32 %v242, %v337
    %v339 = vpop.f32.mrb[0].mxu0
    %340 = vmatprep.mubr.bf16.mxu0 0
    %341 = vmatmul.mubr.bf16.gmra.mrb[0].mxu0 %v215
    %v342 = vpop.f32.mrb[0].mxu0
    %v343 = vadd.f32 %v242, %v342
    %v344 = vpop.f32.mrb[0].mxu0
    %v345 = vpop.f32.mrb[0].mxu0
    %v346 = vadd.f32 %v242, %v345
    %v347 = vpop.f32.mrb[0].mxu0
    %348 = vmatprep.mubr.bf16.mxu0 0
    %349 = vmatmul.mubr.bf16.gmra.mrb[0].mxu0 %v216
    %v350 = vpop.f32.mrb[0].mxu0
    %v351 = vadd.f32 %v242, %v350
    %v352 = vpop.f32.mrb[0].mxu0
    %v353 = vpop.f32.mrb[0].mxu0
    %v354 = vadd.f32 %v242, %v353
    %v355 = vpop.f32.mrb[0].mxu0
    %356 = vmatprep.mubr.bf16.mxu0 0
    %357 = vmatmul.mubr.bf16.gmra.mrb[0].mxu0 %v217
    %v358 = vpop.f32.mrb[0].mxu0
    %v359 = vadd.f32 %v242, %v358
    %v360 = vpop.f32.mrb[0].mxu0
    %v361 = vpop.f32.mrb[0].mxu0
    %v362 = vadd.f32 %v242, %v361
    %v363 = vpop.f32.mrb[0].mxu0
    %364 = vmatprep.mubr.bf16.mxu0 0
    %365 = vmatmul.mubr.bf16.gmra.mrb[0].mxu0 %v218
    %v366 = vpop.f32.mrb[0].mxu0
    %v367 = vadd.f32 %v242, %v366
    %v368 = vpop.f32.mrb[0].mxu0
    %v369 = vpop.f32.mrb[0].mxu0
    %v370 = vadd.f32 %v242, %v369
    %v371 = vpop.f32.mrb[0].mxu0
    %372 = vmatprep.mubr.bf16.mxu0 0
    %373 = vmatmul.mubr.bf16.gmra.mrb[0].mxu0 %v219
    %v374 = vpop.f32.mrb[0].mxu0
    %v375 = vadd.f32 %v242, %v374
    %v376 = vpop.f32.mrb[0].mxu0
    %v377 = vpop.f32.mrb[0].mxu0
    %v378 = vadd.f32 %v242, %v377
    %v379 = vpop.f32.mrb[0].mxu0
    %380 = vmatprep.mubr.bf16.mxu0 0
    %381 = vmatmul.mubr.bf16.gmra.mrb[0].mxu0 %v220
    %v382 = vpop.f32.mrb[0].mxu0
    %v383 = vadd.f32 %v242, %v382
    %v384 = vpop.f32.mrb[0].mxu0
    %v385 = vpop.f32.mrb[0].mxu0
    %v386 = vadd.f32 %v242, %v385
    %v387 = vpop.f32.mrb[0].mxu0
    %388 = vdwg.mxu0
    %v389 = vpack.c.bf16 %v330, %v327
    %v390 = vpack.c.bf16 %v338, %v335
    %v391 = vpack.c.bf16 %v346, %v343
    %v392 = vpack.c.bf16 %v354, %v351
    %v393 = vpack.c.bf16 %v362, %v359
    %v394 = vpack.c.bf16 %v370, %v367
    %v395 = vpack.c.bf16 %v378, %v375
    %v396 = vpack.c.bf16 %v386, %v383
    %v397 = vtanh.bf16.pop %v389
    %v398 = vtanh.bf16.pop %v390
    %v399 = vtanh.bf16.pop %v391
    %v400 = vtanh.bf16.pop %v392
    %v401 = vtanh.bf16.pop %v393
    %v402 = vtanh.bf16.pop %v394
    %v403 = vtanh.bf16.pop %v395
    %v404 = vtanh.bf16.pop %v396
    %v405 = vld [vmem:[%s5] sm:$0xf]
    %v406 = vld [vmem:[%s5 + $0x4] sm:$0xf]
    %v407 = vld [vmem:[%s5 + $0x8] sm:$0xf]
    %v408 = vld [vmem:[%s5 + $0xc] sm:$0xf]
    %v409 = vld [vmem:[%s5 + $0x10] sm:$0xf]
    %v410 = vld [vmem:[%s5 + $0x14] sm:$0xf]
    %v411 = vld [vmem:[%s5 + $0x18] sm:$0xf]
    %v412 = vld [vmem:[%s5 + $0x1c] sm:$0xf]
    %v413 = vld [vmem:[%s5 + $0x20] sm:$0xf]
    %v414 = vld [vmem:[%s5 + $0x24] sm:$0xf]
    %v415 = vld [vmem:[%s5 + $0x28] sm:$0xf]
    %v416 = vld [vmem:[%s5 + $0x2c] sm:$0xf]
    %v417 = vld [vmem:[%s5 + $0x30] sm:$0xf]
    %v418 = vld [vmem:[%s5 + $0x34] sm:$0xf]
    %v419 = vld [vmem:[%s5 + $0x38] sm:$0xf]
    %v420 = vld [vmem:[%s5 + $0x3c] sm:$0xf]
    %v421 = vld [vmem:[%s6] sm:$0x1]
    %v423 = vlaneseq
    %v424 = vshrl.u32 %v423, 7
    %v425 = vsub.s32 0, %v424
    %v426 = vrot.slane %v421, %v425
    %v444 = vunpack.c.l.b16 %v405
    %v445 = vunpack.c.l.b16 %v406
    %v446 = vunpack.c.l.b16 %v407
    %v447 = vunpack.c.l.b16 %v408
    %v448 = vunpack.c.l.b16 %v409
    %v449 = vunpack.c.l.b16 %v410
    %v450 = vunpack.c.l.b16 %v411
    %v451 = vunpack.c.l.b16 %v412
    %v452 = vunpack.c.l.b16 %v413
    %v453 = vunpack.c.l.b16 %v414
    %v454 = vunpack.c.l.b16 %v415
    %v455 = vunpack.c.l.b16 %v416
    %v456 = vunpack.c.l.b16 %v417
    %v457 = vunpack.c.l.b16 %v418
    %v458 = vunpack.c.l.b16 %v419
    %v459 = vunpack.c.l.b16 %v420
    %v460 = vpack.c.b16 %v445, %v444
    %v461 = vpack.c.b16 %v447, %v446
    %v462 = vpack.c.b16 %v449, %v448
    %v463 = vpack.c.b16 %v451, %v450
    %v464 = vpack.c.b16 %v453, %v452
    %v465 = vpack.c.b16 %v455, %v454
    %v466 = vpack.c.b16 %v457, %v456
    %v467 = vpack.c.b16 %v459, %v458
    %476 = vmatprep.subr.bf16.mxu0 0
    %477 = vmatpush1.bf16.msra.mxu0 %v460
    %478 = vmatprep.subr.bf16.mxu0 0
    %479 = vmatpush1.bf16.msra.mxu0 %v461
    %480 = vmatprep.subr.bf16.mxu0 0
    %481 = vmatpush1.bf16.msra.mxu0 %v462
    %482 = vmatprep.subr.bf16.mxu0 0
    %483 = vmatpush1.bf16.msra.mxu0 %v463
    %484 = vmatprep.subr.bf16.mxu0 0
    %485 = vmatpush1.bf16.msra.mxu0 %v464
    %486 = vmatprep.subr.bf16.mxu0 0
    %487 = vmatpush1.bf16.msra.mxu0 %v465
    %488 = vmatprep.subr.bf16.mxu0 0
    %489 = vmatpush1.bf16.msra.mxu0 %v466
    %490 = vmatprep.subr.bf16.mxu0 0
    %491 = vmatpush1.bf16.msra.mxu0 %v467
    %492 = vmatprep.subr.bf16.mxu0 0
    %493 = vmatpush1.bf16.msra.mxu0 0
    %494 = vmatprep.subr.bf16.mxu0 0
    %495 = vmatpush1.bf16.msra.mxu0 0
    %496 = vmatprep.subr.bf16.mxu0 0
    %497 = vmatpush1.bf16.msra.mxu0 0
    %498 = vmatprep.subr.bf16.mxu0 0
    %499 = vmatpush1.bf16.msra.mxu0 0
    %500 = vmatprep.subr.bf16.mxu0 0
    %501 = vmatpush1.bf16.msra.mxu0 0
    %502 = vmatprep.subr.bf16.mxu0 0
    %503 = vmatpush1.bf16.msra.mxu0 0
    %504 = vmatprep.subr.bf16.mxu0 0
    %505 = vmatpush1.bf16.msra.mxu0 0
    %506 = vmatprep.subr.bf16.mxu0 0
    %507 = vmatpush1.bf16.msra.mxu0 0
    %508 = vmatprep.mubr.bf16.mxu0 0
    %509 = vmatmul.mubr.bf16.gmra.mrb[0].mxu0 %v397
    %v510 = vpop.f32.mrb[0].mxu0
    %v511 = vadd.f32 %v426, %v510
    %v512 = vpop.f32.mrb[0].mxu0
    %v513 = vpop.f32.mrb[0].mxu0
    %v514 = vadd.f32 %v426, %v513
    %v515 = vpop.f32.mrb[0].mxu0
    %516 = vmatprep.mubr.bf16.mxu0 0
    %517 = vmatmul.mubr.bf16.gmra.mrb[0].mxu0 %v398
    %v518 = vpop.f32.mrb[0].mxu0
    %v519 = vadd.f32 %v426, %v518
    %v520 = vpop.f32.mrb[0].mxu0
    %v521 = vpop.f32.mrb[0].mxu0
    %v522 = vadd.f32 %v426, %v521
    %v523 = vpop.f32.mrb[0].mxu0
    %524 = vmatprep.mubr.bf16.mxu0 0
    %525 = vmatmul.mubr.bf16.gmra.mrb[0].mxu0 %v399
    %v526 = vpop.f32.mrb[0].mxu0
    %v527 = vadd.f32 %v426, %v526
    %v528 = vpop.f32.mrb[0].mxu0
    %v529 = vpop.f32.mrb[0].mxu0
    %v530 = vadd.f32 %v426, %v529
    %v531 = vpop.f32.mrb[0].mxu0
    %532 = vmatprep.mubr.bf16.mxu0 0
    %533 = vmatmul.mubr.bf16.gmra.mrb[0].mxu0 %v400
    %v534 = vpop.f32.mrb[0].mxu0
    %v535 = vadd.f32 %v426, %v534
    %v536 = vpop.f32.mrb[0].mxu0
    %v537 = vpop.f32.mrb[0].mxu0
    %v538 = vadd.f32 %v426, %v537
    %v539 = vpop.f32.mrb[0].mxu0
    %540 = vmatprep.mubr.bf16.mxu0 0
    %541 = vmatmul.mubr.bf16.gmra.mrb[0].mxu0 %v401
    %v542 = vpop.f32.mrb[0].mxu0
    %v543 = vadd.f32 %v426, %v542
    %v544 = vpop.f32.mrb[0].mxu0
    %v545 = vpop.f32.mrb[0].mxu0
    %v546 = vadd.f32 %v426, %v545
    %v547 = vpop.f32.mrb[0].mxu0
    %548 = vmatprep.mubr.bf16.mxu0 0
    %549 = vmatmul.mubr.bf16.gmra.mrb[0].mxu0 %v402
    %v550 = vpop.f32.mrb[0].mxu0
    %v551 = vadd.f32 %v426, %v550
    %v552 = vpop.f32.mrb[0].mxu0
    %v553 = vpop.f32.mrb[0].mxu0
    %v554 = vadd.f32 %v426, %v553
    %v555 = vpop.f32.mrb[0].mxu0
    %556 = vmatprep.mubr.bf16.mxu0 0
    %557 = vmatmul.mubr.bf16.gmra.mrb[0].mxu0 %v403
    %v558 = vpop.f32.mrb[0].mxu0
    %v559 = vadd.f32 %v426, %v558
    %v560 = vpop.f32.mrb[0].mxu0
    %v561 = vpop.f32.mrb[0].mxu0
    %v562 = vadd.f32 %v426, %v561
    %v563 = vpop.f32.mrb[0].mxu0
    %564 = vmatprep.mubr.bf16.mxu0 0
    %565 = vmatmul.mubr.bf16.gmra.mrb[0].mxu0 %v404
    %v566 = vpop.f32.mrb[0].mxu0
    %v567 = vadd.f32 %v426, %v566
    %v568 = vpop.f32.mrb[0].mxu0
    %v569 = vpop.f32.mrb[0].mxu0
    %v570 = vadd.f32 %v426, %v569
    %v571 = vpop.f32.mrb[0].mxu0
    %572 = vdwg.mxu0
    %v573 = vpack.c.bf16 %v514, %v511
    %v574 = vpack.c.bf16 %v522, %v519
    %v575 = vpack.c.bf16 %v530, %v527
    %v576 = vpack.c.bf16 %v538, %v535
    %v577 = vpack.c.bf16 %v546, %v543
    %v578 = vpack.c.bf16 %v554, %v551
    %v579 = vpack.c.bf16 %v562, %v559
    %v580 = vpack.c.bf16 %v570, %v567
    %v581 = vtanh.bf16.pop %v573
    %v582 = vtanh.bf16.pop %v574
    %v583 = vtanh.bf16.pop %v575
    %v584 = vtanh.bf16.pop %v576
    %v585 = vtanh.bf16.pop %v577
    %v586 = vtanh.bf16.pop %v578
    %v587 = vtanh.bf16.pop %v579
    %v588 = vtanh.bf16.pop %v580
    %v589 = vld [vmem:[%s7] sm:$0x1]
    %v590 = vld [vmem:[#allocation2] sm:$0x1]
    %592 = vset.pattern.permute.xlu0 0
    %593 = vperm.xlu0 %592, %v590
    %v594 = vpop.permute.xlu0 %593
    %v596 = vlaneseq
    %v597 = vshrl.u32 %v596, 7
    %v598 = vsub.s32 0, %v597
    %v599 = vrot.slane %v594, %v598
    %600 = vmatprep.subr.bf16.mxu0 0
    %601 = vmatpush1.bf16.xpose.msra.mxu0 %v581
    %602 = vmatprep.subr.bf16.mxu0 0
    %603 = vmatpush1.bf16.xpose.msra.mxu0 %v582
    %604 = vmatprep.subr.bf16.mxu0 0
    %605 = vmatpush1.bf16.xpose.msra.mxu0 %v583
    %606 = vmatprep.subr.bf16.mxu0 0
    %607 = vmatpush1.bf16.xpose.msra.mxu0 %v584
    %608 = vmatprep.subr.bf16.mxu0 0
    %609 = vmatpush1.bf16.xpose.msra.mxu0 %v585
    %610 = vmatprep.subr.bf16.mxu0 0
    %611 = vmatpush1.bf16.xpose.msra.mxu0 %v586
    %612 = vmatprep.subr.bf16.mxu0 0
    %613 = vmatpush1.bf16.xpose.msra.mxu0 %v587
    %614 = vmatprep.subr.bf16.mxu0 0
    %615 = vmatpush1.bf16.xpose.msra.mxu0 %v588
    %616 = vmatprep.subr.bf16.mxu0 0
    %617 = vmatpush1.bf16.xpose.msra.mxu0 0
    %618 = vmatprep.subr.bf16.mxu0 0
    %619 = vmatpush1.bf16.xpose.msra.mxu0 0
    %620 = vmatprep.subr.bf16.mxu0 0
    %621 = vmatpush1.bf16.xpose.msra.mxu0 0
    %622 = vmatprep.subr.bf16.mxu0 0
    %623 = vmatpush1.bf16.xpose.msra.mxu0 0
    %624 = vmatprep.subr.bf16.mxu0 0
    %625 = vmatpush1.bf16.xpose.msra.mxu0 0
    %626 = vmatprep.subr.bf16.mxu0 0
    %627 = vmatpush1.bf16.xpose.msra.mxu0 0
    %628 = vmatprep.subr.bf16.mxu0 0
    %629 = vmatpush1.bf16.xpose.msra.mxu0 0
    %630 = vmatprep.subr.bf16.mxu0 0
    %631 = vmatpush1.bf16.xpose.msra.mxu0 0
    %632 = vmatprep.mubr.bf16.mxu0 0
    %633 = vmatmul.mubr.bf16.gmra.mrb[0].mxu0 %v589
    %v634 = vpop.f32.mrb[0].mxu0
    %v635 = vadd.f32 %v599, %v634
    %v636 = vpop.f32.mrb[0].mxu0
    %v637 = vpop.f32.mrb[0].mxu0
    %v638 = vpop.f32.mrb[0].mxu0
    %639 = vdwg.mxu0
    %640 = vst [vmem:[#allocation3] sm:$0x1] %v635
    // Predicated region
    $region38: #{tpu_custom_call.1} parent=1 // pred_check
      _
    $region39: #{tpu_custom_call.1} parent=1 // pred_check_branch
      %642 = sbr.rel (0) target = $region41
    $region40: #{tpu_custom_call.1} parent=1 // pred_region
      %s644 = ssub.s32 16, 16
      %645 = vsyncadd [#allocation4], %s644
      %s647 = sshll.u32 [#allocation3], 4
      %s648 = int_to_ptr.vmem [resolvable:$true] %s647
      %650 = dma.vmem_to_hbm [thread:$0]  %s648, 16, %s9, [#allocation4]
    $region41: #{tpu_custom_call.1} parent=1 // pred_fallthru
      _
    // Predicated region
    $region42: #{tpu_custom_call.1} parent=1 // pred_check
      _
    $region43: #{tpu_custom_call.1} parent=1 // pred_check_branch
      %652 = sbr.rel (0) target = $region45
    $region44: #{tpu_custom_call.1} parent=1 // pred_region
      %653 = dma.done [#allocation4], 16
    $region45: #{tpu_custom_call.1} parent=1 // pred_fallthru
      _
    %654 = vsyncpa [#allocation4], 1

</llo_original>
